<compile_context>
chip_gen: v6e
topology: v6e:2x2x1
jax: 0.10.0
libtpu: 0.0.40
codegen_flags: <defaults>
</compile_context>

<pallas_src>
import jax
import jax.numpy as jnp
from jax.experimental import pallas as pl
from jax.experimental.pallas import tpu as pltpu

_LANES = 256        # interleaved (start, end) pairs -> 128 boxes per row
_SUBLANES = 8       # f32 sublane count


def _iou_loss_kernel(a_ref, b_ref, out_ref):
    a = a_ref[...]                      # (block_rows, 256): s,e,s,e,... interleaved
    b = b_ref[...]

    m = jnp.minimum(a, b)               # even lanes: min(start), odd lanes: min(end)
    M = jnp.maximum(a, b)               # even lanes: max(start), odd lanes: max(end)

    # Shift toward higher lane index by 1 so odd lane 2k+1 sees lane 2k's value.
    m_s = pltpu.roll(m, shift=1, axis=1)    # odd lanes: min(start)
    M_s = pltpu.roll(M, shift=1, axis=1)    # odd lanes: max(start)

    inter = jnp.maximum(m - M_s, 0.0)   # odd lanes: clamp(min(end) - max(start), 0)
    union = jnp.maximum(M - m_s, 0.0)   # odd lanes: clamp(max(end) - min(start), 0)
    iou = inter * pl.reciprocal(union + 1e-6, approx=False)

    # Only odd lanes hold a valid IoU; even lanes hold cross-pair garbage.
    lane = jax.lax.broadcasted_iota(jnp.int32, iou.shape, 1)
    iou = jnp.where(lane % 2 == 1, iou, 0.0)

    # Lane/sublane-parallel partial sums: layout-preserving reshape, VPU adds only.
    blk = iou.shape[0]
    out_ref[...] = jnp.sum(iou.reshape(blk // _SUBLANES, _SUBLANES, _LANES), axis=0)


def _interleave_start_end(box: jax.Array) -> jax.Array:
    """[N, D] -> [N, 2] float32 with columns (box[:, 0], box[:, -1])."""
    if box.shape[1] == 2:
        out = box
    else:
        out = jnp.stack([box[:, 0], box[:, -1]], axis=1)
    return out if out.dtype == jnp.float32 else out.astype(jnp.float32)


def iou_loss(box_a: jax.Array, box_b: jax.Array, *,
             block_rows: int = 4096, jnp_fallback_n: int = 0) -> jax.Array:
    """Pallas implementation of IoULoss.forward: 1 - mean(IoU). Returns a scalar.

    block_rows: rows (of 128 boxes each) per grid step. 4096 (16 MiB of
      double-buffered input) is a good default on v6e/v7x; 2048 also fine on v5e.
    jnp_fallback_n: if N is below this threshold, use the pure-jnp path
      (launch overhead dominates for tiny N). Default 0 = always use the kernel.
    """
    assert box_a.shape == box_b.shape and box_a.ndim == 2 and box_a.shape[1] >= 1
    assert block_rows >= _SUBLANES and block_rows % _SUBLANES == 0
    n = box_a.shape[0]

    if n < jnp_fallback_n:
        return _iou_loss_ref(box_a, box_b)

    a2 = _interleave_start_end(box_a)
    b2 = _interleave_start_end(box_b)

    boxes_per_row = _LANES // 2
    rows_needed = pl.cdiv(n, boxes_per_row)
    rows_rounded = pl.cdiv(rows_needed, _SUBLANES) * _SUBLANES
    block_rows = min(block_rows, rows_rounded)
    num_blocks = pl.cdiv(rows_rounded, block_rows)
    rows_total = num_blocks * block_rows

    def pack(x):
        flat = x.reshape(-1)                       # metadata-only (contiguous)
        pad = rows_total * _LANES - flat.shape[0]
        if pad:
            flat = jnp.pad(flat, (0, pad))         # single pass, only if needed
        return flat.reshape(rows_total, _LANES)

    in_spec = pl.BlockSpec((block_rows, _LANES), lambda i: (i, 0))
    partial = pl.pallas_call(
        _iou_loss_kernel,
        out_shape=jax.ShapeDtypeStruct((num_blocks * _SUBLANES, _LANES), jnp.float32),
        grid_spec=pltpu.PrefetchScalarGridSpec(
            num_scalar_prefetch=0,
            grid=(num_blocks,),
            in_specs=[in_spec, in_spec],
            out_specs=pl.BlockSpec((_SUBLANES, _LANES), lambda i: (i, 0)),
        ),
        compiler_params=pltpu.CompilerParams(
            dimension_semantics=("parallel",),
            vmem_limit_bytes=40 << 20),
    )(pack(a2), pack(b2))

    # Tiny finish in the wrapper: tree-reduce the partials, scale by 1/N.
    return 1.0 - jnp.sum(partial) / n


def _iou_loss_ref(box_a, box_b):
    inter = jnp.clip(jnp.minimum(box_a[:, -1], box_b[:, -1])
                     - jnp.maximum(box_a[:, 0], box_b[:, 0]), 0.0)
    union = jnp.clip(jnp.maximum(box_a[:, -1], box_b[:, -1])
                     - jnp.minimum(box_a[:, 0], box_b[:, 0]), 0.0)
    iou = inter / (union + 1e-6)
    return 1.0 - iou.mean()


def _make_boxes(key, n):
    ka, kb = jax.random.split(key)
    a_start = jax.random.uniform(ka, (n, 1), jnp.float32, 0.0, 0.5)
    a_len = jax.random.uniform(jax.random.fold_in(ka, 1), (n, 1), jnp.float32, 0.05, 0.5)
    box_a = jnp.concatenate([a_start, a_start + a_len], axis=1)

    b_start = jax.random.uniform(kb, (n, 1), jnp.float32, 0.0, 0.5)
    b_len = jax.random.uniform(jax.random.fold_in(kb, 1), (n, 1), jnp.float32, 0.05, 0.5)
    box_b = jnp.concatenate([b_start, b_start + b_len], axis=1)
    return box_a, box_b


if __name__ == "__main__":
    key = jax.random.PRNGKey(0)

    # Case 1: N = 128 (single block, padded up to the (8, 256) tile).
    box_a, box_b = _make_boxes(key, 128)
    loss = iou_loss(box_a, box_b)
    jax.block_until_ready(loss)
    ref = _iou_loss_ref(box_a, box_b)
    assert jnp.allclose(loss, ref, atol=1e-5, rtol=1e-5), (loss, ref)

    # Case 2: N = 2000 with a tiny block -> 2-block parallel grid + padded tail.
    box_a2, box_b2 = _make_boxes(jax.random.fold_in(key, 7), 2000)
    loss2 = iou_loss(box_a2, box_b2, block_rows=8)
    jax.block_until_ready(loss2)
    ref2 = _iou_loss_ref(box_a2, box_b2)
    assert jnp.allclose(loss2, ref2, atol=1e-5, rtol=1e-5), (loss2, ref2)

    # Case 3: boxes with extra middle columns (only columns 0 and -1 are used).
    box_a3, box_b3 = _make_boxes(jax.random.fold_in(key, 13), 96)
    mid = jnp.zeros((96, 2), jnp.float32)
    box_a3w = jnp.concatenate([box_a3[:, :1], mid, box_a3[:, 1:]], axis=1)
    box_b3w = jnp.concatenate([box_b3[:, :1], mid, box_b3[:, 1:]], axis=1)
    loss3 = iou_loss(box_a3w, box_b3w)
    jax.block_until_ready(loss3)
    ref3 = _iou_loss_ref(box_a3w, box_b3w)
    assert jnp.allclose(loss3, ref3, atol=1e-5, rtol=1e-5), (loss3, ref3)

    print("KERNEL_OK")
</pallas_src>

<mosaic_0001>
module attributes {stable_mosaic.version = 11 : i64} {
  func.func @_iou_loss_kernel(%arg0: i32, %arg1: memref<8x256xf32, #tpu.memory_space<vmem>>, %arg2: memref<8x256xf32, #tpu.memory_space<vmem>>, %arg3: memref<8x256xf32, #tpu.memory_space<vmem>>) attributes {dimension_semantics = [#tpu.dimension_semantics<parallel>], iteration_bounds = array<i64: 1>, scalar_prefetch = 0 : i64, scratch_operands = 0 : i64, tpu.core_type = #tpu.core_type<tc>, window_params = [{transform_indices = @transform_0, window_bounds = array<i64: 8, 256>}, {transform_indices = @transform_1, window_bounds = array<i64: 8, 256>}, {transform_indices = @transform_2, window_bounds = array<i64: 8, 256>}]} {
    %c0 = arith.constant 0 : index
    %c0_0 = arith.constant 0 : index
    %0 = vector.load %arg1[%c0, %c0_0] : memref<8x256xf32, #tpu.memory_space<vmem>>, vector<8x256xf32>
    %c0_1 = arith.constant 0 : index
    %c0_2 = arith.constant 0 : index
    %1 = vector.load %arg2[%c0_1, %c0_2] : memref<8x256xf32, #tpu.memory_space<vmem>>, vector<8x256xf32>
    %2 = arith.minimumf %0, %1 : vector<8x256xf32>
    %3 = arith.maximumf %0, %1 : vector<8x256xf32>
    %c1_i32 = arith.constant 1 : i32
    %4 = tpu.dynamic_rotate %2 by %c1_i32 dim 1 : vector<8x256xf32>, i32 -> vector<8x256xf32>
    %c1_i32_3 = arith.constant 1 : i32
    %5 = tpu.dynamic_rotate %3 by %c1_i32_3 dim 1 : vector<8x256xf32>, i32 -> vector<8x256xf32>
    %6 = arith.subf %2, %5 : vector<8x256xf32>
    %cst = arith.constant 0.000000e+00 : f32
    %7 = vector.broadcast %cst : f32 to vector<8x256xf32>
    %8 = arith.maximumf %6, %7 : vector<8x256xf32>
    %9 = arith.subf %3, %4 : vector<8x256xf32>
    %cst_4 = arith.constant 0.000000e+00 : f32
    %10 = vector.broadcast %cst_4 : f32 to vector<8x256xf32>
    %11 = arith.maximumf %9, %10 : vector<8x256xf32>
    %cst_5 = arith.constant 9.99999997E-7 : f32
    %12 = vector.broadcast %cst_5 : f32 to vector<8x256xf32>
    %13 = arith.addf %11, %12 : vector<8x256xf32>
    %14 = tpu.reciprocal %13 : vector<8x256xf32> -> vector<8x256xf32>
    %15 = arith.mulf %8, %14 : vector<8x256xf32>
    %16 = tpu.iota {dimensions = array<i32: 1>} : vector<8x256xi32>
    %c2_i32 = arith.constant 2 : i32
    %c0_i32 = arith.constant 0 : i32
    %17 = arith.cmpi eq, %c2_i32, %c0_i32 : i32
    %c1_i32_6 = arith.constant 1 : i32
    %18 = arith.select %17, %c1_i32_6, %c2_i32 : i32
    %19 = vector.broadcast %18 : i32 to vector<8x256xi32>
    %20 = arith.remsi %16, %19 : vector<8x256xi32>
    %c0_i32_7 = arith.constant 0 : i32
    %21 = vector.broadcast %c0_i32_7 : i32 to vector<8x256xi32>
    %22 = arith.cmpi ne, %20, %21 : vector<8x256xi32>
    %c0_i32_8 = arith.constant 0 : i32
    %23 = vector.broadcast %c0_i32_8 : i32 to vector<8x256xi32>
    %24 = arith.cmpi slt, %20, %23 : vector<8x256xi32>
    %c0_i32_9 = arith.constant 0 : i32
    %25 = arith.cmpi slt, %18, %c0_i32_9 : i32
    %26 = vector.broadcast %25 : i1 to vector<8x256xi1>
    %27 = vector.broadcast %26 : vector<8x256xi1> to vector<8x256xi1>
    %28 = arith.xori %24, %27 : vector<8x256xi1>
    %29 = arith.andi %28, %22 : vector<8x256xi1>
    %30 = vector.broadcast %18 : i32 to vector<8x256xi32>
    %31 = arith.addi %20, %30 : vector<8x256xi32>
    %32 = arith.select %29, %31, %20 : vector<8x256xi1>, vector<8x256xi32>
    %c1_i32_10 = arith.constant 1 : i32
    %33 = vector.broadcast %c1_i32_10 : i32 to vector<8x256xi32>
    %34 = arith.cmpi eq, %32, %33 : vector<8x256xi32>
    %cst_11 = arith.constant 0.000000e+00 : f32
    %35 = vector.broadcast %cst_11 : f32 to vector<8x256xf32>
    %36 = arith.select %34, %15, %35 : vector<8x256xi1>, vector<8x256xf32>
    %37 = vector.shape_cast %36 : vector<8x256xf32> to vector<1x8x256xf32>
    %cst_12 = arith.constant dense<0.000000e+00> : vector<8x256xf32>
    %38 = vector.multi_reduction <add>, %37, %cst_12 [0] : vector<1x8x256xf32> to vector<8x256xf32>
    %c0_13 = arith.constant 0 : index
    %c0_14 = arith.constant 0 : index
    %39 = vector.load %arg3[%c0_13, %c0_14] : memref<8x256xf32, #tpu.memory_space<vmem>>, vector<8x256xf32>
    tpu.vector_store %arg3[%c0_13, %c0_14], %38 {strides = array<i32>} : memref<8x256xf32, #tpu.memory_space<vmem>>, vector<8x256xf32>,
    return
  }
  func.func @transform_0(%arg0: i32) -> (i32, i32) {
    %c0_i32 = arith.constant 0 : i32
    %c0_i32_0 = arith.constant 0 : i32
    return %arg0, %c0_i32 : i32, i32
  }
  func.func @transform_1(%arg0: i32) -> (i32, i32) {
    %c0_i32 = arith.constant 0 : i32
    %c0_i32_0 = arith.constant 0 : i32
    return %arg0, %c0_i32 : i32, i32
  }
  func.func @transform_2(%arg0: i32) -> (i32, i32) {
    %c0_i32 = arith.constant 0 : i32
    %c0_i32_0 = arith.constant 0 : i32
    return %arg0, %c0_i32 : i32, i32
  }
}

</mosaic_0001>

<llo_original>
// kernel: tpu_custom_call.1
$region0: #{tpu_custom_call.1}
  #allocation0 [shape = 'u32[]', space=smem, size = 0x4, offset = 0x4, fixed_abs, tag = 'smem constant byte address 0x4 - core index']
  #allocation1 [shape = 'u32[144,128]{1,0:T(1,128)}', space=vmem, size = 0x12000, scoped, tag = 'internal scratch']
  %s0 = inlined_call_operand.hbm [shape: f32[8,256], index: 0, kind: input, shape index: {}]
  %s1 = inlined_call_operand.hbm [shape: f32[8,256], index: 1, kind: input, shape index: {}]
  %s2 = inlined_call_operand.hbm [shape: f32[8,256], index: 2, kind: output, shape index: {}]
  %s3 = sld [smem:[#allocation0]]
  $region26: #{tpu_custom_call.1} parent=0
    _
  %s5 = ssub.s32 1, %s3
  %s6 = scalar_select 0, %s5, %s3
  $region1: #{tpu_custom_call.1} parent=0
    #allocation2 [shape = 'u8[8192]{0}', space=vmem, size = 0x2000, scoped, tag = 'input window, operand 0, single buffered']
    #allocation3 [shape = 's32[1]{0}', space=sflag, size = 0x4, scoped, tag = 'scoped memory for tpu_custom_call.1']
    #allocation4 [shape = 's32[1]{0}', space=sflag, size = 0x4, scoped, tag = 'scoped memory for tpu_custom_call.1']
    #allocation5 [shape = 'u8[8192]{0}', space=vmem, size = 0x2000, scoped, tag = 'input window, operand 1, single buffered']
    #allocation6 [shape = 's32[1]{0}', space=sflag, size = 0x4, scoped, tag = 'scoped memory for tpu_custom_call.1']
    #allocation7 [shape = 'u8[8192]{0}', space=vmem, size = 0x2000, scoped, tag = 'output window, operand 0, single buffered']
    %7 = vsyncpa [#allocation3], 0
    %8 = vsyncpa [#allocation6], 0
    %9 = vsyncpa [#allocation4], 0
    // Predicated region
    $region2: #{tpu_custom_call.1} parent=1 // pred_check
      _
    $region3: #{tpu_custom_call.1} parent=1 // pred_check_branch
      %11 = sbr.rel (0) target = $region5
    $region4: #{tpu_custom_call.1} parent=1 // pred_region
      %s13 = ssub.s32 256, 256
      %14 = vsyncadd [#allocation3], %s13
      %s16 = sshll.u32 [#allocation2], 4
      %s17 = int_to_ptr.vmem [resolvable:$true] %s16
      %19 = dma.hbm_to_vmem [thread:$0]  %s0, 256, %s17, [#allocation3]
    $region5: #{tpu_custom_call.1} parent=1 // pred_fallthru
      _
    // Predicated region
    $region6: #{tpu_custom_call.1} parent=1 // pred_check
      _
    $region7: #{tpu_custom_call.1} parent=1 // pred_check_branch
      %21 = sbr.rel (0) target = $region9
    $region8: #{tpu_custom_call.1} parent=1 // pred_region
      %s23 = ssub.s32 256, 256
      %24 = vsyncadd [#allocation6], %s23
      %s26 = sshll.u32 [#allocation5], 4
      %s27 = int_to_ptr.vmem [resolvable:$true] %s26
      %29 = dma.hbm_to_vmem [thread:$0]  %s1, 256, %s27, [#allocation6]
    $region9: #{tpu_custom_call.1} parent=1 // pred_fallthru
      _
    // Predicated region
    $region10: #{tpu_custom_call.1} parent=1 // pred_check
      _
    $region11: #{tpu_custom_call.1} parent=1 // pred_check_branch
      %31 = sbr.rel (0) target = $region13
    $region12: #{tpu_custom_call.1} parent=1 // pred_region
      %32 = dma.done [#allocation3], 256
    $region13: #{tpu_custom_call.1} parent=1 // pred_fallthru
      _
    // Predicated region
    $region14: #{tpu_custom_call.1} parent=1 // pred_check
      _
    $region15: #{tpu_custom_call.1} parent=1 // pred_check_branch
      %34 = sbr.rel (0) target = $region17
    $region16: #{tpu_custom_call.1} parent=1 // pred_region
      %35 = dma.done [#allocation6], 256
    $region17: #{tpu_custom_call.1} parent=1 // pred_fallthru
      _
    %v36 = vld [vmem:[#allocation2] sm:$0xff]
    %v37 = vld [vmem:[#allocation2 + $0x8] sm:$0xff]
    %v38 = vld [vmem:[#allocation5] sm:$0xff]
    %v39 = vld [vmem:[#allocation5 + $0x8] sm:$0xff]
    %v40 = vmin.f32 %v36, %v38
    %v41 = vmin.f32 %v37, %v39
    %v42 = vmax.f32 %v36, %v38
    %v43 = vmax.f32 %v37, %v39
    %44 = vrot.lane.b32.xlu0 %v40, 1
    %v45 = vpop.permute.xlu0 %44
    %46 = vrot.lane.b32.xlu0 %v41, 1
    %v47 = vpop.permute.xlu0 %46
    %v48 = vlaneseq
    %v49 = vand.u32 %v48, 127
    %vm50 = vcmp.lt.s32.totalorder %v49, 1
    %v51 = vsel %vm50, %v45, %v47
    %v52 = vsel %vm50, %v47, %v45
    %53 = vrot.lane.b32.xlu0 %v42, 1
    %v54 = vpop.permute.xlu0 %53
    %55 = vrot.lane.b32.xlu0 %v43, 1
    %v56 = vpop.permute.xlu0 %55
    %v57 = vsel %vm50, %v54, %v56
    %v58 = vsel %vm50, %v56, %v54
    %v59 = vsub.f32 %v40, %v58
    %v60 = vsub.f32 %v41, %v57
    %v61 = vmax.f32 %v59, 0.0
    %v62 = vmax.f32 %v60, 0.0
    %v63 = vsub.f32 %v42, %v52
    %v64 = vsub.f32 %v43, %v51
    %v65 = vmax.f32 %v63, 0.0
    %v66 = vmax.f32 %v64, 0.0
    %v67 = vadd.f32 %v65, 1e-06
    %v68 = vadd.f32 %v66, 1e-06
    %v69 = vrcp.pop %v67
    %v70 = vrcp.pop %v68
    %v71 = vmul.f32 %v61, %v69
    %v72 = vmul.f32 %v62, %v70
    %v73 = vadd.s32 %v49, 128
    %vm74 = vcmp.lt.s32.totalorder %v49, 0
    %v75 = vsub.s32 0, %v49
    %v76 = vsel %vm74, %v75, %v49
    %v77 = vshrl.u32 %v76, 1
    %v78 = vand.u32 %v76, 1
    %v79 = vsub.s32 0, %v78
    %v80 = vsel %vm74, %v79, %v78
    %vm81 = vcmp.lt.s32.totalorder %v73, 0
    %v82 = vsub.s32 0, %v73
    %v83 = vsel %vm81, %v82, %v73
    %v84 = vshrl.u32 %v83, 1
    %v85 = vand.u32 %v83, 1
    %v86 = vsub.s32 0, %v85
    %v87 = vsel %vm81, %v86, %v85
    %vm88 = vcmp.ne.s32.totalorder %v80, 0
    %vm89 = vcmp.ne.s32.totalorder %v87, 0
    %vm90 = vcmp.lt.s32.totalorder %v80, 0
    %vm91 = vcmp.lt.s32.totalorder %v87, 0
    %vm92 = vmand %vm90, %vm88
    %vm93 = vmand %vm91, %vm89
    %v94 = vadd.s32 %v80, 2
    %v95 = vadd.s32 %v87, 2
    %v96 = vsel %vm92, %v94, %v80
    %v97 = vsel %vm93, %v95, %v87
    %vm98 = vcmp.eq.s32.totalorder %v96, 1
    %vm99 = vcmp.eq.s32.totalorder %v97, 1
    %v100 = vsel %vm98, %v71, 0.0
    %v101 = vsel %vm99, %v72, 0.0
    %v102 = vadd.f32 %v100, 0.0
    %v103 = vadd.f32 %v101, 0.0
    %104 = vst [vmem:[#allocation7] sm:$0xff] %v102
    %105 = vst [vmem:[#allocation7 + $0x8] sm:$0xff] %v103
    // Predicated region
    $region18: #{tpu_custom_call.1} parent=1 // pred_check
      _
    $region19: #{tpu_custom_call.1} parent=1 // pred_check_branch
      %107 = sbr.rel (0) target = $region21
    $region20: #{tpu_custom_call.1} parent=1 // pred_region
      %s109 = ssub.s32 256, 256
      %110 = vsyncadd [#allocation4], %s109
      %s112 = sshll.u32 [#allocation7], 4
      %s113 = int_to_ptr.vmem [resolvable:$true] %s112
      %115 = dma.vmem_to_hbm [thread:$0]  %s113, 256, %s2, [#allocation4]
    $region21: #{tpu_custom_call.1} parent=1 // pred_fallthru
      _
    // Predicated region
    $region22: #{tpu_custom_call.1} parent=1 // pred_check
      _
    $region23: #{tpu_custom_call.1} parent=1 // pred_check_branch
      %117 = sbr.rel (0) target = $region25
    $region24: #{tpu_custom_call.1} parent=1 // pred_region
      %118 = dma.done [#allocation4], 256
    $region25: #{tpu_custom_call.1} parent=1 // pred_fallthru
      _
    %119 = vsyncpa [#allocation3], 1
    %120 = vsyncpa [#allocation6], 1
    %121 = vsyncpa [#allocation4], 1

</llo_original>
